<compile_context>
chip_gen: v6e
topology: v6e:2x2x1
jax: 0.10.0
libtpu: 0.0.40
codegen_flags: <defaults>
</compile_context>

<pallas_src>
import functools

import jax
import jax.numpy as jnp
from jax.experimental import pallas as pl
from jax.experimental.pallas import tpu as pltpu

# SELU constants (match torch.nn.functional.selu)
_SELU_SCALE = 1.0507009873554804934193349852946
_SELU_ALPHA = 1.6732632423543772848170429916717


def _round_up(n, m):
    return (n + m - 1) // m * m


def _distinguisher_kernel(x_ref, w1_ref, b1_ref, w2_ref, b2_ref, o_ref):
    # Layer 1 on the MXU: [TB, E] @ [E, H] -> [TB, H], f32 accumulation.
    h = jnp.dot(x_ref[...], w1_ref[...], preferred_element_type=jnp.float32)
    h = h + b1_ref[...]
    # SELU (VPU select/mul, exp on EUP). Dropout(p=0) is identity -> nothing to do.
    h = _SELU_SCALE * jnp.where(h > 0.0, h, _SELU_ALPHA * (jnp.exp(h) - 1.0))
    # Layer 2: contract the hidden dim ('oh,bh->ob') so the result comes out
    # lane-dense along the batch axis (no [TB, 1] column -> no masked stores).
    # w2_ref is zero-padded to 8 output rows for sublane alignment; rows 1..7 of
    # y8 are exactly zero.
    y8 = jax.lax.dot_general(
        w2_ref[...], h,
        dimension_numbers=(((1,), (1,)), ((), ())),
        preferred_element_type=jnp.float32,
    )                                   # [8, TB]
    y = y8[0:1, :] + b2_ref[...]        # [1, TB]
    o_ref[...] = y.astype(o_ref.dtype)


@functools.partial(jax.jit, static_argnames=("block_b", "compute_dtype"))
def distinguisher_forward(x, w1, b1, w2, b2, *, block_b=256, compute_dtype=None):
    """Fused Distinguisher (nlayers=2) forward.

    x:  [B, E] activations
    w1: [E, H] first linear weight (torch weight.T)
    b1: [H]
    w2: [1, H] second linear weight (torch layout [out=1, in=H])
    b2: [1]
    returns [B, 1]
    """
    B, E = x.shape
    H = w1.shape[1]
    out_dtype = x.dtype

    # --- batch tiling: big lane-aligned tiles, pad ragged batches (no assert) ---
    assert block_b % 8 == 0, "block_b must be a multiple of 8"
    b8 = _round_up(B, 8)
    if b8 <= block_b:
        bb = b8                        # single tile covers the whole (padded) batch
    else:
        bb = _round_up(block_b, 128)   # multi-tile: keep (1, bb) output lane-dense
    Bp = _round_up(B, bb)
    num_tiles = Bp // bb
    if Bp != B:
        x = jnp.pad(x, ((0, Bp - B), (0, 0)))

    # Optional bf16 streaming of the big operands (v6e/v7x); accumulate in f32.
    if compute_dtype is not None:
        x = x.astype(compute_dtype)
        w1 = w1.astype(compute_dtype)

    b1_2d = b1.reshape(1, H).astype(jnp.float32)
    b2_2d = b2.reshape(1, 1).astype(jnp.float32)
    # Zero-pad W2 to 8 output rows so the second matmul's M dim is sublane-aligned.
    w2_8 = jnp.pad(w2.reshape(1, H).astype(jnp.float32), ((0, 7), (0, 0)))

    itemsize = jnp.dtype(x.dtype).itemsize
    cost = pl.CostEstimate(
        flops=2 * Bp * E * H + 2 * 8 * Bp * H + 6 * Bp * H,
        transcendentals=Bp * H,
        bytes_accessed=Bp * E * itemsize + E * H * itemsize
        + (8 * H + H + 1) * 4 + Bp * 4,
    )

    out = pl.pallas_call(
        _distinguisher_kernel,
        out_shape=jax.ShapeDtypeStruct((1, Bp), out_dtype),
        grid_spec=pltpu.PrefetchScalarGridSpec(
            num_scalar_prefetch=0,
            grid=(num_tiles,),
            in_specs=[
                pl.BlockSpec((bb, E), lambda i: (i, 0)),   # x tile (streamed)
                pl.BlockSpec((E, H), lambda i: (0, 0)),    # W1 (resident)
                pl.BlockSpec((1, H), lambda i: (0, 0)),    # b1
                pl.BlockSpec((8, H), lambda i: (0, 0)),    # W2 (padded to 8 rows)
                pl.BlockSpec((1, 1), lambda i: (0, 0)),    # b2
            ],
            out_specs=pl.BlockSpec((1, bb), lambda i: (0, i)),  # lane-dense output
        ),
        compiler_params=pltpu.CompilerParams(
            dimension_semantics=("parallel",),
        ),
        cost_estimate=cost,
    )(x, w1, b1_2d, w2_8, b2_2d)

    # (1, Bp) flattens in batch order; slice off padding, return torch-style [B, 1].
    return out.reshape(Bp, 1)[:B]


def _selu_ref(x):
    return _SELU_SCALE * jnp.where(x > 0.0, x, _SELU_ALPHA * (jnp.exp(x) - 1.0))


def _reference(x, w1, b1, w2, b2):
    h = _selu_ref(x @ w1 + b1)
    return h @ w2.T + b2


if __name__ == "__main__":
    # Shapes consistent with the module defaults (emb_dim=32, inner_dim=32);
    # batch large enough that the kernel actually tiles (grid of 2 at block_b=256).
    B, E, H = 512, 32, 32
    key = jax.random.PRNGKey(0)
    kx, kw1, kb1, kw2, kb2 = jax.random.split(key, 5)

    x = jax.random.normal(kx, (B, E), dtype=jnp.float32)
    # PyTorch nn.Linear stores weight as [out, in]; w1 is kept transposed [in, out]
    # so the kernel does x @ W1 directly; w2 keeps the torch [1, H] layout.
    w1 = jax.random.normal(kw1, (E, H), dtype=jnp.float32) * 0.1
    b1 = jax.random.normal(kb1, (H,), dtype=jnp.float32) * 0.1
    w2 = jax.random.normal(kw2, (1, H), dtype=jnp.float32) * 0.1
    b2 = jax.random.normal(kb2, (1,), dtype=jnp.float32) * 0.1

    y_ref = _reference(x, w1, b1, w2, b2)

    # f32 path, multi-tile grid.
    y = jax.block_until_ready(distinguisher_forward(x, w1, b1, w2, b2, block_b=256))
    assert y.shape == (B, 1)
    assert jnp.allclose(y, y_ref, atol=2e-5, rtol=2e-5), "f32 mismatch vs reference"

    # bf16-streamed path (v6e/v7x bandwidth optimization), f32 accumulation.
    y_bf16 = jax.block_until_ready(
        distinguisher_forward(x, w1, b1, w2, b2, block_b=256,
                              compute_dtype=jnp.bfloat16))
    assert y_bf16.shape == (B, 1)
    assert jnp.allclose(y_bf16, y_ref, atol=5e-2, rtol=5e-2), "bf16 mismatch"

    # Ragged batch (no divisibility assert anymore): pads to the tile, slices back.
    Br = 300
    y_rag = jax.block_until_ready(
        distinguisher_forward(x[:Br], w1, b1, w2, b2, block_b=256))
    assert y_rag.shape == (Br, 1)
    assert jnp.allclose(y_rag, y_ref[:Br], atol=2e-5, rtol=2e-5), "ragged mismatch"

    print("KERNEL_OK")
</pallas_src>

<mosaic_0001>
module attributes {stable_mosaic.version = 11 : i64} {
  func.func @_distinguisher_kernel(%arg0: i32, %arg1: memref<256x32xf32, #tpu.memory_space<vmem>>, %arg2: memref<32x32xf32, #tpu.memory_space<vmem>>, %arg3: memref<1x32xf32, #tpu.memory_space<vmem>>, %arg4: memref<8x32xf32, #tpu.memory_space<vmem>>, %arg5: memref<1x1xf32, #tpu.memory_space<vmem>>, %arg6: memref<1x256xf32, #tpu.memory_space<vmem>>) attributes {dimension_semantics = [#tpu.dimension_semantics<parallel>], iteration_bounds = array<i64: 2>, scalar_prefetch = 0 : i64, scratch_operands = 0 : i64, tpu.core_type = #tpu.core_type<tc>, window_params = [{transform_indices = @transform_0, window_bounds = array<i64: 256, 32>}, {pipeline_mode = #tpu.pipeline_mode<synchronous>, transform_indices = @transform_1, window_bounds = array<i64: 32, 32>}, {pipeline_mode = #tpu.pipeline_mode<synchronous>, transform_indices = @transform_2, window_bounds = array<i64: 1, 32>}, {pipeline_mode = #tpu.pipeline_mode<synchronous>, transform_indices = @transform_3, window_bounds = array<i64: 8, 32>}, {pipeline_mode = #tpu.pipeline_mode<synchronous>, transform_indices = @transform_4, window_bounds = array<i64: 1, 1>}, {transform_indices = @transform_5, window_bounds = array<i64: 1, 256>}]} {
    %c0 = arith.constant 0 : index
    %c0_0 = arith.constant 0 : index
    %0 = vector.load %arg1[%c0, %c0_0] : memref<256x32xf32, #tpu.memory_space<vmem>>, vector<256x32xf32>
    %c0_1 = arith.constant 0 : index
    %c0_2 = arith.constant 0 : index
    %1 = vector.load %arg2[%c0_1, %c0_2] : memref<32x32xf32, #tpu.memory_space<vmem>>, vector<32x32xf32>
    %cst = arith.constant dense<0.000000e+00> : vector<256x32xf32>
    %2 = tpu.matmul %0, %1, %cst {dimension_numbers = #tpu.dot_dimension_numbers<[1], [0], [0], [1], [0, 0, 1, 1], [], []>} : vector<256x32xf32>, vector<32x32xf32>, vector<256x32xf32> -> vector<256x32xf32>
    %c0_3 = arith.constant 0 : index
    %c0_4 = arith.constant 0 : index
    %3 = vector.load %arg3[%c0_3, %c0_4] : memref<1x32xf32, #tpu.memory_space<vmem>>, vector<1x32xf32>
    %4 = vector.broadcast %3 : vector<1x32xf32> to vector<256x32xf32>
    %5 = arith.addf %2, %4 : vector<256x32xf32>
    %cst_5 = arith.constant 0.000000e+00 : f32
    %6 = vector.broadcast %cst_5 : f32 to vector<256x32xf32>
    %7 = arith.cmpf ogt, %5, %6 : vector<256x32xf32>
    %8 = math.exp %5 : vector<256x32xf32>
    %cst_6 = arith.constant 1.000000e+00 : f32
    %9 = vector.broadcast %cst_6 : f32 to vector<256x32xf32>
    %10 = arith.subf %8, %9 : vector<256x32xf32>
    %cst_7 = arith.constant 1.67326319 : f32
    %11 = vector.broadcast %cst_7 : f32 to vector<256x32xf32>
    %12 = arith.mulf %11, %10 : vector<256x32xf32>
    %13 = arith.select %7, %5, %12 : vector<256x32xi1>, vector<256x32xf32>
    %cst_8 = arith.constant 1.05070102 : f32
    %14 = vector.broadcast %cst_8 : f32 to vector<256x32xf32>
    %15 = arith.mulf %14, %13 : vector<256x32xf32>
    %c0_9 = arith.constant 0 : index
    %c0_10 = arith.constant 0 : index
    %16 = vector.load %arg4[%c0_9, %c0_10] : memref<8x32xf32, #tpu.memory_space<vmem>>, vector<8x32xf32>
    %cst_11 = arith.constant dense<0.000000e+00> : vector<8x256xf32>
    %17 = tpu.matmul %16, %15, %cst_11 {dimension_numbers = #tpu.dot_dimension_numbers<[1], [1], [0], [0], [0, 0, 1, 0], [], []>} : vector<8x32xf32>, vector<256x32xf32>, vector<8x256xf32> -> vector<8x256xf32>
    %18 = vector.extract_strided_slice %17 {offsets = [0, 0], sizes = [1, 256], strides = [1, 1]} : vector<8x256xf32> to vector<1x256xf32>
    %c0_12 = arith.constant 0 : index
    %c0_13 = arith.constant 0 : index
    %19 = vector.load %arg5[%c0_12, %c0_13] : memref<1x1xf32, #tpu.memory_space<vmem>>, vector<1x1xf32>
    %20 = vector.broadcast %19 : vector<1x1xf32> to vector<1x256xf32>
    %21 = arith.addf %18, %20 : vector<1x256xf32>
    %c0_14 = arith.constant 0 : index
    %c0_15 = arith.constant 0 : index
    %22 = vector.load %arg6[%c0_14, %c0_15] : memref<1x256xf32, #tpu.memory_space<vmem>>, vector<1x256xf32>
    tpu.vector_store %arg6[%c0_14, %c0_15], %21 {strides = array<i32>} : memref<1x256xf32, #tpu.memory_space<vmem>>, vector<1x256xf32>,
    return
  }
  func.func @transform_0(%arg0: i32) -> (i32, i32) {
    %c0_i32 = arith.constant 0 : i32
    %c0_i32_0 = arith.constant 0 : i32
    return %arg0, %c0_i32 : i32, i32
  }
  func.func @transform_1(%arg0: i32) -> (i32, i32) {
    %c0_i32 = arith.constant 0 : i32
    %c0_i32_0 = arith.constant 0 : i32
    %c0_i32_1 = arith.constant 0 : i32
    return %c0_i32, %c0_i32_0 : i32, i32
  }
  func.func @transform_2(%arg0: i32) -> (i32, i32) {
    %c0_i32 = arith.constant 0 : i32
    %c0_i32_0 = arith.constant 0 : i32
    %c0_i32_1 = arith.constant 0 : i32
    return %c0_i32, %c0_i32_0 : i32, i32
  }
  func.func @transform_3(%arg0: i32) -> (i32, i32) {
    %c0_i32 = arith.constant 0 : i32
    %c0_i32_0 = arith.constant 0 : i32
    %c0_i32_1 = arith.constant 0 : i32
    return %c0_i32, %c0_i32_0 : i32, i32
  }
  func.func @transform_4(%arg0: i32) -> (i32, i32) {
    %c0_i32 = arith.constant 0 : i32
    %c0_i32_0 = arith.constant 0 : i32
    %c0_i32_1 = arith.constant 0 : i32
    return %c0_i32, %c0_i32_0 : i32, i32
  }
  func.func @transform_5(%arg0: i32) -> (i32, i32) {
    %c0_i32 = arith.constant 0 : i32
    %c0_i32_0 = arith.constant 0 : i32
    return %c0_i32, %arg0 : i32, i32
  }
}

</mosaic_0001>

<llo_original>
// kernel: distinguisher_forward.1
$region0: #{distinguisher_forward.1}
  #allocation0 [shape = 'u32[]', space=smem, size = 0x4, offset = 0x4, fixed_abs, tag = 'smem constant byte address 0x4 - core index']
  #allocation1 [shape = 'u32[144,128]{1,0:T(1,128)}', space=vmem, size = 0x12000, scoped, tag = 'internal scratch']
  #allocation2 [shape = 'f32[1,1]{1,0:T(1,128)S(1)}', space=vmem, size = 0x200, scoped, tag = 'scoped memory for distinguisher_forward.1']
  %s0 = inlined_call_operand.vmem [shape: f32[512,32], index: 0, kind: input, shape index: {}]
  %s1 = inlined_call_operand.vmem [shape: f32[32,32], index: 1, kind: input, shape index: {}]
  %s2 = inlined_call_operand.vmem [shape: f32[1,32], index: 2, kind: input, shape index: {}]
  %s3 = inlined_call_operand.vmem [shape: f32[8,32], index: 3, kind: input, shape index: {}]
  %s4 = inlined_call_operand.<no memory space> [shape: f32[1,1], index: 4, kind: input, shape index: {}]
  %s5 = inlined_call_operand.hbm [shape: f32[1,512], index: 5, kind: output, shape index: {}]
  %s6 = sld [smem:[#allocation0]]
  $region53: #{distinguisher_forward.1} parent=0
    _
  %s8 = ssub.s32 1, %s6
  %s9 = scalar_select 0, %s8, %s6
  %v10 = vstv %s4
  %11 = vst [vmem:[#allocation2] sm:$0x1] %v10
  $region1: #{distinguisher_forward.1} parent=0
    #allocation3 [shape = 'u8[2048]{0}', space=vmem, size = 0x800, scoped, tag = 'output window, operand 0']
    #allocation4 [shape = 's32[2]{0}', space=sflag, size = 0x8, scoped, tag = 'scoped memory for distinguisher_forward.1']
    %12 = vsyncpa [#allocation4], 0
    %s13 = scalar_lea.sflag [#allocation4], 1
    %14 = vsyncpa %s13, 0
    loop: start=0, step=1, limit=4
    $region2: #{distinguisher_forward.1} parent=1 // loop_pre_header
      _
    $region3: #{distinguisher_forward.1} parent=1 // loop_header
      %s16 = sphi 0, %s20
      %p17 = scmp.ge.s32.totalorder %s16, 4
      %s26 = sphi 0, %s28
      %s29 = sphi 0, %s26
      %s30 = sphi 0, %s29
      %s46 = sphi 0, %s30
      %s50 = sphi 0, %s50
      %s52 = sphi 0, %s50
      %s53 = sphi 0, %s52
      %s67 = sphi 0, %s53
      %s71 = sphi 0, %s71
      %s73 = sphi 0, %s71
      %s74 = sphi 0, %s73
      %s88 = sphi 0, %s74
      %s92 = sphi 0, %s92
      %s94 = sphi 0, %s92
      %s95 = sphi 0, %s94
      %s109 = sphi 0, %s95
      %s113 = sphi 0, %s113
      %s115 = sphi 0, %s113
      %s116 = sphi 0, %s115
      %s130 = sphi 0, %s116
      %s136 = sphi 0, %s138
      %s139 = sphi 0, %s136
      %s140 = sphi 0, %s139
      %s156 = sphi 0, %s140
    $region4: #{distinguisher_forward.1} parent=1 // loop_header_branch
      %19 = sbr.rel (%p17) target = $region8
    $region5: #{distinguisher_forward.1} parent=1 // loop_body
      %s21 = ssub.s32 %s16, 1
      %s22 = ssub.s32 %s16, 2
      %s23 = sadd.s32 %s16, 1
      %s24 = ssub.s32 %s16, %s23
      %p25 = scmp.eq.s32.totalorder %s24, 0
      %s27 = sadd.s32 %s26, 1
      %s28 = scalar_select %p25, %s26, %s27
      %p31 = pneg %p25
      %p32 = scmp.eq.s32.totalorder %s16, 1
      %p33 = por %p31, %p32
      %p34 = scmp.ne.s32.totalorder %s26, %s29
      %p35 = scmp.eq.s32.totalorder %s16, 0
      %p36 = por %p34, %p35
      %p37 = scmp.ne.s32.totalorder %s26, %s29
      %p38 = scmp.eq.s32.totalorder %s21, 1
      %p39 = por %p37, %p38
      %p40 = scmp.ne.s32.totalorder %s29, %s30
      %p41 = scmp.eq.s32.totalorder %s21, 0
      %p42 = por %p40, %p41
      %p43 = scmp.ne.s32.totalorder %s29, %s30
      %p44 = scmp.eq.s32.totalorder %s22, 1
      %p45 = por %p43, %p44
      %p47 = scmp.ne.s32.totalorder %s30, %s46
      %p48 = scmp.eq.s32.totalorder %s22, 0
      %p49 = por %p47, %p48
      %s51 = sadd.s32 %s50, 1
      %p54 = scmp.eq.s32.totalorder %s16, 1
      %p55 = scmp.ne.s32.totalorder %s50, %s52
      %p56 = scmp.eq.s32.totalorder %s16, 0
      %p57 = por %p55, %p56
      %p58 = scmp.ne.s32.totalorder %s50, %s52
      %p59 = scmp.eq.s32.totalorder %s21, 1
      %p60 = por %p58, %p59
      %p61 = scmp.ne.s32.totalorder %s52, %s53
      %p62 = scmp.eq.s32.totalorder %s21, 0
      %p63 = por %p61, %p62
      %p64 = scmp.ne.s32.totalorder %s52, %s53
      %p65 = scmp.eq.s32.totalorder %s22, 1
      %p66 = por %p64, %p65
      %p68 = scmp.ne.s32.totalorder %s53, %s67
      %p69 = scmp.eq.s32.totalorder %s22, 0
      %p70 = por %p68, %p69
      %s72 = sadd.s32 %s71, 1
      %p75 = scmp.eq.s32.totalorder %s16, 1
      %p76 = scmp.ne.s32.totalorder %s71, %s73
      %p77 = scmp.eq.s32.totalorder %s16, 0
      %p78 = por %p76, %p77
      %p79 = scmp.ne.s32.totalorder %s71, %s73
      %p80 = scmp.eq.s32.totalorder %s21, 1
      %p81 = por %p79, %p80
      %p82 = scmp.ne.s32.totalorder %s73, %s74
      %p83 = scmp.eq.s32.totalorder %s21, 0
      %p84 = por %p82, %p83
      %p85 = scmp.ne.s32.totalorder %s73, %s74
      %p86 = scmp.eq.s32.totalorder %s22, 1
      %p87 = por %p85, %p86
      %p89 = scmp.ne.s32.totalorder %s74, %s88
      %p90 = scmp.eq.s32.totalorder %s22, 0
      %p91 = por %p89, %p90
      %s93 = sadd.s32 %s92, 1
      %p96 = scmp.eq.s32.totalorder %s16, 1
      %p97 = scmp.ne.s32.totalorder %s92, %s94
      %p98 = scmp.eq.s32.totalorder %s16, 0
      %p99 = por %p97, %p98
      %p100 = scmp.ne.s32.totalorder %s92, %s94
      %p101 = scmp.eq.s32.totalorder %s21, 1
      %p102 = por %p100, %p101
      %p103 = scmp.ne.s32.totalorder %s94, %s95
      %p104 = scmp.eq.s32.totalorder %s21, 0
      %p105 = por %p103, %p104
      %p106 = scmp.ne.s32.totalorder %s94, %s95
      %p107 = scmp.eq.s32.totalorder %s22, 1
      %p108 = por %p106, %p107
      %p110 = scmp.ne.s32.totalorder %s95, %s109
      %p111 = scmp.eq.s32.totalorder %s22, 0
      %p112 = por %p110, %p111
      %s114 = sadd.s32 %s113, 1
      %p117 = scmp.eq.s32.totalorder %s16, 1
      %p118 = scmp.ne.s32.totalorder %s113, %s115
      %p119 = scmp.eq.s32.totalorder %s16, 0
      %p120 = por %p118, %p119
      %p121 = scmp.ne.s32.totalorder %s113, %s115
      %p122 = scmp.eq.s32.totalorder %s21, 1
      %p123 = por %p121, %p122
      %p124 = scmp.ne.s32.totalorder %s115, %s116
      %p125 = scmp.eq.s32.totalorder %s21, 0
      %p126 = por %p124, %p125
      %p127 = scmp.ne.s32.totalorder %s115, %s116
      %p128 = scmp.eq.s32.totalorder %s22, 1
      %p129 = por %p127, %p128
      %p131 = scmp.ne.s32.totalorder %s116, %s130
      %p132 = scmp.eq.s32.totalorder %s22, 0
      %p133 = por %p131, %p132
      %s134 = ssub.s32 %s16, %s23
      %p135 = scmp.eq.s32.totalorder %s134, 0
      %s137 = sadd.s32 %s136, 1
      %s138 = scalar_select %p135, %s136, %s137
      %p141 = pneg %p135
      %p142 = scmp.eq.s32.totalorder %s16, 1
      %p143 = por %p141, %p142
      %p144 = scmp.ne.s32.totalorder %s136, %s139
      %p145 = scmp.eq.s32.totalorder %s16, 0
      %p146 = por %p144, %p145
      %p147 = scmp.ne.s32.totalorder %s136, %s139
      %p148 = scmp.eq.s32.totalorder %s21, 1
      %p149 = por %p147, %p148
      %p150 = scmp.ne.s32.totalorder %s139, %s140
      %p151 = scmp.eq.s32.totalorder %s21, 0
      %p152 = por %p150, %p151
      %p153 = scmp.ne.s32.totalorder %s139, %s140
      %p154 = scmp.eq.s32.totalorder %s22, 1
      %p155 = por %p153, %p154
      %p157 = scmp.ne.s32.totalorder %s140, %s156
      %p158 = scmp.eq.s32.totalorder %s22, 0
      %p159 = por %p157, %p158
      %p160 = scmp.le.s32.totalorder 1, %s16
      %p161 = scmp.lt.s32.totalorder %s16, 3
      %p162 = pnand %p160, %p161
      %p163 = pneg %p162
      // Predicated region
      $region9: #{distinguisher_forward.1} parent=5 // pred_check
        _
      $region10: #{distinguisher_forward.1} parent=5 // pred_check_branch
        %165 = sbr.rel (%p162) target = $region12
      $region11: #{distinguisher_forward.1} parent=5 // pred_region
        %s166 = ssub.s32 %s16, 1
        // Predicated region
        $region13: #{distinguisher_forward.1} parent=11 // pred_check
          %p167 = pneg %p63
        $region14: #{distinguisher_forward.1} parent=11 // pred_check_branch
          %169 = sbr.rel (%p167) target = $region16
        $region15: #{distinguisher_forward.1} parent=11 // pred_region
          _
        $region16: #{distinguisher_forward.1} parent=11 // pred_fallthru
          _
        // Predicated region
        $region17: #{distinguisher_forward.1} parent=11 // pred_check
          %p170 = pneg %p84
        $region18: #{distinguisher_forward.1} parent=11 // pred_check_branch
          %172 = sbr.rel (%p170) target = $region20
        $region19: #{distinguisher_forward.1} parent=11 // pred_region
          _
        $region20: #{distinguisher_forward.1} parent=11 // pred_fallthru
          _
        // Predicated region
        $region21: #{distinguisher_forward.1} parent=11 // pred_check
          %p173 = pneg %p105
        $region22: #{distinguisher_forward.1} parent=11 // pred_check_branch
          %175 = sbr.rel (%p173) target = $region24
        $region23: #{distinguisher_forward.1} parent=11 // pred_region
          _
        $region24: #{distinguisher_forward.1} parent=11 // pred_fallthru
          _
        // Predicated region
        $region25: #{distinguisher_forward.1} parent=11 // pred_check
          %p176 = pneg %p126
        $region26: #{distinguisher_forward.1} parent=11 // pred_check_branch
          %178 = sbr.rel (%p176) target = $region28
        $region27: #{distinguisher_forward.1} parent=11 // pred_region
          _
        $region28: #{distinguisher_forward.1} parent=11 // pred_fallthru
          _
      $region12: #{distinguisher_forward.1} parent=5 // pred_fallthru
        _
      %p179 = scmp.lt.s32.totalorder %s16, 2
      // Predicated region
      $region29: #{distinguisher_forward.1} parent=5 // pred_check
        %p180 = pneg %p179
      $region30: #{distinguisher_forward.1} parent=5 // pred_check_branch
        %182 = sbr.rel (%p180) target = $region32
      $region31: #{distinguisher_forward.1} parent=5 // pred_region
        // Predicated region
        $region33: #{distinguisher_forward.1} parent=31 // pred_check
          %p183 = pneg %p36
        $region34: #{distinguisher_forward.1} parent=31 // pred_check_branch
          %185 = sbr.rel (%p183) target = $region36
        $region35: #{distinguisher_forward.1} parent=31 // pred_region
          %s186 = smul.u32 32, %s16
          %p187 = scmp.lt.s32.totalorder %s186, 63
          %s188 = scalar_select %p187, %s186, 63
          %s189 = smul.addr %s188, 8
          %s190 = scalar_lea.vmem %s0, %s189
          %s191 = smul.u32 32, %s16
        $region36: #{distinguisher_forward.1} parent=31 // pred_fallthru
          _
      $region32: #{distinguisher_forward.1} parent=5 // pred_fallthru
        _
      %p192 = scmp.le.s32.totalorder 1, %s16
      %p193 = scmp.lt.s32.totalorder %s16, 3
      %p194 = pnand %p192, %p193
      %p195 = pneg %p194
      // Predicated region
      $region37: #{distinguisher_forward.1} parent=5 // pred_check
        _
      $region38: #{distinguisher_forward.1} parent=5 // pred_check_branch
        %197 = sbr.rel (%p194) target = $region40
      $region39: #{distinguisher_forward.1} parent=5 // pred_region
        %s198 = ssub.s32 %s16, 1
        %s199 = smul.u32 32, %s21
        %p200 = scmp.lt.s32.totalorder %s199, 63
        %s201 = scalar_select %p200, %s199, 63
        %s202 = smul.addr %s201, 8
        %s203 = scalar_lea.vmem %s0, %s202
        %p204 = pneg %p42
        %p205 = pneg %p39
        %p206 = pneg %p63
        %p207 = pneg %p60
        %p208 = pneg %p84
        %p209 = pneg %p81
        %p210 = pneg %p105
        %p211 = pneg %p102
        %p212 = pneg %p126
        %p213 = pneg %p123
        %p214 = pneg %p152
        %p215 = pneg %p149
        %s216 = sand.u32 %s139, 1
        %s217 = scalar_lea.sflag [#allocation4], %s216
        %s218 = sand.u32 %s139, 1
        %s219 = smul.addr %s218, 2
        %s220 = scalar_lea.vmem [#allocation3], %s219
        %s221 = smul.u32 32, %s21
        %p222 = scmp.lt.s32.totalorder %s221, 63
        %s223 = scalar_select %p222, %s221, 63
        %s224 = smul.addr %s223, 8
        %s225 = scalar_lea.vmem %s0, %s224
        %s226 = smul.u32 32, %s21
        %s227 = smul.u32 2, %s21
        %v228 = vld [vmem:[%s225] sm:$0xff]
        %v229 = vld [vmem:[%s225 + $0x8] sm:$0xff]
        %v230 = vld [vmem:[%s225 + $0x10] sm:$0xff]
        %v231 = vld [vmem:[%s225 + $0x18] sm:$0xff]
        %v232 = vld [vmem:[%s225 + $0x20] sm:$0xff]
        %v233 = vld [vmem:[%s225 + $0x28] sm:$0xff]
        %v234 = vld [vmem:[%s225 + $0x30] sm:$0xff]
        %v235 = vld [vmem:[%s225 + $0x38] sm:$0xff]
        %v236 = vld [vmem:[%s225 + $0x40] sm:$0xff]
        %v237 = vld [vmem:[%s225 + $0x48] sm:$0xff]
        %v238 = vld [vmem:[%s225 + $0x50] sm:$0xff]
        %v239 = vld [vmem:[%s225 + $0x58] sm:$0xff]
        %v240 = vld [vmem:[%s225 + $0x60] sm:$0xff]
        %v241 = vld [vmem:[%s225 + $0x68] sm:$0xff]
        %v242 = vld [vmem:[%s225 + $0x70] sm:$0xff]
        %v243 = vld [vmem:[%s225 + $0x78] sm:$0xff]
        %v244 = vld [vmem:[%s225 + $0x80] sm:$0xff]
        %v245 = vld [vmem:[%s225 + $0x88] sm:$0xff]
        %v246 = vld [vmem:[%s225 + $0x90] sm:$0xff]
        %v247 = vld [vmem:[%s225 + $0x98] sm:$0xff]
        %v248 = vld [vmem:[%s225 + $0xa0] sm:$0xff]
        %v249 = vld [vmem:[%s225 + $0xa8] sm:$0xff]
        %v250 = vld [vmem:[%s225 + $0xb0] sm:$0xff]
        %v251 = vld [vmem:[%s225 + $0xb8] sm:$0xff]
        %v252 = vld [vmem:[%s225 + $0xc0] sm:$0xff]
        %v253 = vld [vmem:[%s225 + $0xc8] sm:$0xff]
        %v254 = vld [vmem:[%s225 + $0xd0] sm:$0xff]
        %v255 = vld [vmem:[%s225 + $0xd8] sm:$0xff]
        %v256 = vld [vmem:[%s225 + $0xe0] sm:$0xff]
        %v257 = vld [vmem:[%s225 + $0xe8] sm:$0xff]
        %v258 = vld [vmem:[%s225 + $0xf0] sm:$0xff]
        %v259 = vld [vmem:[%s225 + $0xf8] sm:$0xff]
        %v260 = vld [vmem:[%s1] sm:$0xff]
        %v261 = vld [vmem:[%s1 + $0x8] sm:$0xff]
        %v262 = vld [vmem:[%s1 + $0x10] sm:$0xff]
        %v263 = vld [vmem:[%s1 + $0x18] sm:$0xff]
        %v264 = vld [vmem:[%s2] sm:$0x1]
        %v266 = vlaneseq
        %v267 = vshrl.u32 %v266, 7
        %v268 = vsub.s32 0, %v267
        %v269 = vrot.slane %v264, %v268
        %vm271 = vcmask 261120
        %v273 = vsel %vm271, %v228, 0
        %v276 = vsel %vm271, %v229, 0
        %v279 = vsel %vm271, %v230, 0
        %v282 = vsel %vm271, %v231, 0
        %v285 = vsel %vm271, %v232, 0
        %v288 = vsel %vm271, %v233, 0
        %v291 = vsel %vm271, %v234, 0
        %v294 = vsel %vm271, %v235, 0
        %v297 = vsel %vm271, %v236, 0
        %v300 = vsel %vm271, %v237, 0
        %v303 = vsel %vm271, %v238, 0
        %v306 = vsel %vm271, %v239, 0
        %v309 = vsel %vm271, %v240, 0
        %v312 = vsel %vm271, %v241, 0
        %v315 = vsel %vm271, %v242, 0
        %v318 = vsel %vm271, %v243, 0
        %v321 = vsel %vm271, %v244, 0
        %v324 = vsel %vm271, %v245, 0
        %v327 = vsel %vm271, %v246, 0
        %v330 = vsel %vm271, %v247, 0
        %v333 = vsel %vm271, %v248, 0
        %v336 = vsel %vm271, %v249, 0
        %v339 = vsel %vm271, %v250, 0
        %v342 = vsel %vm271, %v251, 0
        %v345 = vsel %vm271, %v252, 0
        %v348 = vsel %vm271, %v253, 0
        %v351 = vsel %vm271, %v254, 0
        %v354 = vsel %vm271, %v255, 0
        %v357 = vsel %vm271, %v256, 0
        %v360 = vsel %vm271, %v257, 0
        %v363 = vsel %vm271, %v258, 0
        %v366 = vsel %vm271, %v259, 0
        %368 = vmatprep.subr.mxu0 0.0
        %369 = vmatpush1.msra.mxu0 0.0
        %370 = vmatprep.subr.mxu0 0.0
        %371 = vmatpush1.msra.mxu0 0.0
        %372 = vmatprep.subr.mxu0 0.0
        %373 = vmatpush1.msra.mxu0 0.0
        %374 = vmatprep.subr.mxu0 0.0
        %375 = vmatpush1.msra.mxu0 0.0
        %376 = vmatprep.subr.mxu0 0.0
        %377 = vmatpush1.msra.mxu0 0.0
        %378 = vmatprep.subr.mxu0 0.0
        %379 = vmatpush1.msra.mxu0 0.0
        %380 = vmatprep.subr.mxu0 0.0
        %381 = vmatpush1.msra.mxu0 0.0
        %382 = vmatprep.subr.mxu0 0.0
        %383 = vmatpush1.msra.mxu0 0.0
        %384 = vmatprep.subr.mxu0 0.0
        %385 = vmatpush1.msra.mxu0 0.0
        %386 = vmatprep.subr.mxu0 0.0
        %387 = vmatpush1.msra.mxu0 0.0
        %388 = vmatprep.subr.mxu0 0.0
        %389 = vmatpush1.msra.mxu0 0.0
        %390 = vmatprep.subr.mxu0 0.0
        %391 = vmatpush1.msra.mxu0 0.0
        %392 = vmatprep.subr.mxu0 0.0
        %393 = vmatpush1.msra.mxu0 %v263
        %394 = vmatprep.subr.mxu0 0.0
        %395 = vmatpush1.msra.mxu0 %v262
        %396 = vmatprep.subr.mxu0 0.0
        %397 = vmatpush1.msra.mxu0 %v261
        %398 = vmatprep.subr.mxu0 0.0
        %399 = vmatpush1.msra.mxu0 %v260
        %400 = vmatprep.subr.mxu0 0.0
        %401 = vmatpush2.msra.mxu0 0.0
        %402 = vmatprep.subr.mxu0 0.0
        %403 = vmatpush2.msra.mxu0 0.0
        %404 = vmatprep.subr.mxu0 0.0
        %405 = vmatpush2.msra.mxu0 0.0
        %406 = vmatprep.subr.mxu0 0.0
        %407 = vmatpush2.msra.mxu0 0.0
        %408 = vmatprep.subr.mxu0 0.0
        %409 = vmatpush2.msra.mxu0 0.0
        %410 = vmatprep.subr.mxu0 0.0
        %411 = vmatpush2.msra.mxu0 0.0
        %412 = vmatprep.subr.mxu0 0.0
        %413 = vmatpush2.msra.mxu0 0.0
        %414 = vmatprep.subr.mxu0 0.0
        %415 = vmatpush2.msra.mxu0 0.0
        %416 = vmatprep.subr.mxu0 0.0
        %417 = vmatpush2.msra.mxu0 0.0
        %418 = vmatprep.subr.mxu0 0.0
        %419 = vmatpush2.msra.mxu0 0.0
        %420 = vmatprep.subr.mxu0 0.0
        %421 = vmatpush2.msra.mxu0 0.0
        %422 = vmatprep.subr.mxu0 0.0
        %423 = vmatpush2.msra.mxu0 0.0
        %424 = vmatprep.subr.mxu0 0.0
        %425 = vmatpush2.msra.mxu0 0.0
        %426 = vmatprep.subr.mxu0 0.0
        %427 = vmatpush2.msra.mxu0 0.0
        %428 = vmatprep.subr.mxu0 0.0
        %429 = vmatpush2.msra.mxu0 0.0
        %430 = vmatprep.subr.mxu0 0.0
        %431 = vmatpush2.msra.mxu0 0.0
        %432 = vmatprep.mubr.f32.mxu0 0.0
        %433 = vmatmul.mubr.f32.gmra.mxu0 %v273
        %v434 = vpop.f32.mrf.mxu0
        %v435 = vadd.f32 %v269, %v434
        %v436 = vpop.f32.mrf.mxu0
        %437 = vmatprep.mubr.f32.mxu0 0.0
        %438 = vmatmul.mubr.f32.gmra.mxu0 %v276
        %v439 = vpop.f32.mrf.mxu0
        %v440 = vadd.f32 %v269, %v439
        %v441 = vpop.f32.mrf.mxu0
        %442 = vmatprep.mubr.f32.mxu0 0.0
        %443 = vmatmul.mubr.f32.gmra.mxu0 %v279
        %v444 = vpop.f32.mrf.mxu0
        %v445 = vadd.f32 %v269, %v444
        %v446 = vpop.f32.mrf.mxu0
        %447 = vmatprep.mubr.f32.mxu0 0.0
        %448 = vmatmul.mubr.f32.gmra.mxu0 %v282
        %v449 = vpop.f32.mrf.mxu0
        %v450 = vadd.f32 %v269, %v449
        %v451 = vpop.f32.mrf.mxu0
        %452 = vmatprep.mubr.f32.mxu0 0.0
        %453 = vmatmul.mubr.f32.gmra.mxu0 %v285
        %v454 = vpop.f32.mrf.mxu0
        %v455 = vadd.f32 %v269, %v454
        %v456 = vpop.f32.mrf.mxu0
        %457 = vmatprep.mubr.f32.mxu0 0.0
        %458 = vmatmul.mubr.f32.gmra.mxu0 %v288
        %v459 = vpop.f32.mrf.mxu0
        %v460 = vadd.f32 %v269, %v459
        %v461 = vpop.f32.mrf.mxu0
        %462 = vmatprep.mubr.f32.mxu0 0.0
        %463 = vmatmul.mubr.f32.gmra.mxu0 %v291
        %v464 = vpop.f32.mrf.mxu0
        %v465 = vadd.f32 %v269, %v464
        %v466 = vpop.f32.mrf.mxu0
        %467 = vmatprep.mubr.f32.mxu0 0.0
        %468 = vmatmul.mubr.f32.gmra.mxu0 %v294
        %v469 = vpop.f32.mrf.mxu0
        %v470 = vadd.f32 %v269, %v469
        %v471 = vpop.f32.mrf.mxu0
        %472 = vmatprep.mubr.f32.mxu0 0.0
        %473 = vmatmul.mubr.f32.gmra.mxu0 %v297
        %v474 = vpop.f32.mrf.mxu0
        %v475 = vadd.f32 %v269, %v474
        %v476 = vpop.f32.mrf.mxu0
        %477 = vmatprep.mubr.f32.mxu0 0.0
        %478 = vmatmul.mubr.f32.gmra.mxu0 %v300
        %v479 = vpop.f32.mrf.mxu0
        %v480 = vadd.f32 %v269, %v479
        %v481 = vpop.f32.mrf.mxu0
        %482 = vmatprep.mubr.f32.mxu0 0.0
        %483 = vmatmul.mubr.f32.gmra.mxu0 %v303
        %v484 = vpop.f32.mrf.mxu0
        %v485 = vadd.f32 %v269, %v484
        %v486 = vpop.f32.mrf.mxu0
        %487 = vmatprep.mubr.f32.mxu0 0.0
        %488 = vmatmul.mubr.f32.gmra.mxu0 %v306
        %v489 = vpop.f32.mrf.mxu0
        %v490 = vadd.f32 %v269, %v489
        %v491 = vpop.f32.mrf.mxu0
        %492 = vmatprep.mubr.f32.mxu0 0.0
        %493 = vmatmul.mubr.f32.gmra.mxu0 %v309
        %v494 = vpop.f32.mrf.mxu0
        %v495 = vadd.f32 %v269, %v494
        %v496 = vpop.f32.mrf.mxu0
        %497 = vmatprep.mubr.f32.mxu0 0.0
        %498 = vmatmul.mubr.f32.gmra.mxu0 %v312
        %v499 = vpop.f32.mrf.mxu0
        %v500 = vadd.f32 %v269, %v499
        %v501 = vpop.f32.mrf.mxu0
        %502 = vmatprep.mubr.f32.mxu0 0.0
        %503 = vmatmul.mubr.f32.gmra.mxu0 %v315
        %v504 = vpop.f32.mrf.mxu0
        %v505 = vadd.f32 %v269, %v504
        %v506 = vpop.f32.mrf.mxu0
        %507 = vmatprep.mubr.f32.mxu0 0.0
        %508 = vmatmul.mubr.f32.gmra.mxu0 %v318
        %v509 = vpop.f32.mrf.mxu0
        %v510 = vadd.f32 %v269, %v509
        %v511 = vpop.f32.mrf.mxu0
        %512 = vmatprep.mubr.f32.mxu0 0.0
        %513 = vmatmul.mubr.f32.gmra.mxu0 %v321
        %v514 = vpop.f32.mrf.mxu0
        %v515 = vadd.f32 %v269, %v514
        %v516 = vpop.f32.mrf.mxu0
        %517 = vmatprep.mubr.f32.mxu0 0.0
        %518 = vmatmul.mubr.f32.gmra.mxu0 %v324
        %v519 = vpop.f32.mrf.mxu0
        %v520 = vadd.f32 %v269, %v519
        %v521 = vpop.f32.mrf.mxu0
        %522 = vmatprep.mubr.f32.mxu0 0.0
        %523 = vmatmul.mubr.f32.gmra.mxu0 %v327
        %v524 = vpop.f32.mrf.mxu0
        %v525 = vadd.f32 %v269, %v524
        %v526 = vpop.f32.mrf.mxu0
        %527 = vmatprep.mubr.f32.mxu0 0.0
        %528 = vmatmul.mubr.f32.gmra.mxu0 %v330
        %v529 = vpop.f32.mrf.mxu0
        %v530 = vadd.f32 %v269, %v529
        %v531 = vpop.f32.mrf.mxu0
        %532 = vmatprep.mubr.f32.mxu0 0.0
        %533 = vmatmul.mubr.f32.gmra.mxu0 %v333
        %v534 = vpop.f32.mrf.mxu0
        %v535 = vadd.f32 %v269, %v534
        %v536 = vpop.f32.mrf.mxu0
        %537 = vmatprep.mubr.f32.mxu0 0.0
        %538 = vmatmul.mubr.f32.gmra.mxu0 %v336
        %v539 = vpop.f32.mrf.mxu0
        %v540 = vadd.f32 %v269, %v539
        %v541 = vpop.f32.mrf.mxu0
        %542 = vmatprep.mubr.f32.mxu0 0.0
        %543 = vmatmul.mubr.f32.gmra.mxu0 %v339
        %v544 = vpop.f32.mrf.mxu0
        %v545 = vadd.f32 %v269, %v544
        %v546 = vpop.f32.mrf.mxu0
        %547 = vmatprep.mubr.f32.mxu0 0.0
        %548 = vmatmul.mubr.f32.gmra.mxu0 %v342
        %v549 = vpop.f32.mrf.mxu0
        %v550 = vadd.f32 %v269, %v549
        %v551 = vpop.f32.mrf.mxu0
        %552 = vmatprep.mubr.f32.mxu0 0.0
        %553 = vmatmul.mubr.f32.gmra.mxu0 %v345
        %v554 = vpop.f32.mrf.mxu0
        %v555 = vadd.f32 %v269, %v554
        %v556 = vpop.f32.mrf.mxu0
        %557 = vmatprep.mubr.f32.mxu0 0.0
        %558 = vmatmul.mubr.f32.gmra.mxu0 %v348
        %v559 = vpop.f32.mrf.mxu0
        %v560 = vadd.f32 %v269, %v559
        %v561 = vpop.f32.mrf.mxu0
        %562 = vmatprep.mubr.f32.mxu0 0.0
        %563 = vmatmul.mubr.f32.gmra.mxu0 %v351
        %v564 = vpop.f32.mrf.mxu0
        %v565 = vadd.f32 %v269, %v564
        %v566 = vpop.f32.mrf.mxu0
        %567 = vmatprep.mubr.f32.mxu0 0.0
        %568 = vmatmul.mubr.f32.gmra.mxu0 %v354
        %v569 = vpop.f32.mrf.mxu0
        %v570 = vadd.f32 %v269, %v569
        %v571 = vpop.f32.mrf.mxu0
        %572 = vmatprep.mubr.f32.mxu0 0.0
        %573 = vmatmul.mubr.f32.gmra.mxu0 %v357
        %v574 = vpop.f32.mrf.mxu0
        %v575 = vadd.f32 %v269, %v574
        %v576 = vpop.f32.mrf.mxu0
        %577 = vmatprep.mubr.f32.mxu0 0.0
        %578 = vmatmul.mubr.f32.gmra.mxu0 %v360
        %v579 = vpop.f32.mrf.mxu0
        %v580 = vadd.f32 %v269, %v579
        %v581 = vpop.f32.mrf.mxu0
        %582 = vmatprep.mubr.f32.mxu0 0.0
        %583 = vmatmul.mubr.f32.gmra.mxu0 %v363
        %v584 = vpop.f32.mrf.mxu0
        %v585 = vadd.f32 %v269, %v584
        %v586 = vpop.f32.mrf.mxu0
        %587 = vmatprep.mubr.f32.mxu0 0.0
        %588 = vmatmul.mubr.f32.gmra.mxu0 %v366
        %v589 = vpop.f32.mrf.mxu0
        %v590 = vadd.f32 %v269, %v589
        %v591 = vpop.f32.mrf.mxu0
        %592 = vdwg.mxu0
        %vm593 = vcmp.gt.f32.partialorder %v435, 0.0
        %vm594 = vcmp.gt.f32.partialorder %v440, 0.0
        %vm595 = vcmp.gt.f32.partialorder %v445, 0.0
        %vm596 = vcmp.gt.f32.partialorder %v450, 0.0
        %vm597 = vcmp.gt.f32.partialorder %v455, 0.0
        %vm598 = vcmp.gt.f32.partialorder %v460, 0.0
        %vm599 = vcmp.gt.f32.partialorder %v465, 0.0
        %vm600 = vcmp.gt.f32.partialorder %v470, 0.0
        %vm601 = vcmp.gt.f32.partialorder %v475, 0.0
        %vm602 = vcmp.gt.f32.partialorder %v480, 0.0
        %vm603 = vcmp.gt.f32.partialorder %v485, 0.0
        %vm604 = vcmp.gt.f32.partialorder %v490, 0.0
        %vm605 = vcmp.gt.f32.partialorder %v495, 0.0
        %vm606 = vcmp.gt.f32.partialorder %v500, 0.0
        %vm607 = vcmp.gt.f32.partialorder %v505, 0.0
        %vm608 = vcmp.gt.f32.partialorder %v510, 0.0
        %vm609 = vcmp.gt.f32.partialorder %v515, 0.0
        %vm610 = vcmp.gt.f32.partialorder %v520, 0.0
        %vm611 = vcmp.gt.f32.partialorder %v525, 0.0
        %vm612 = vcmp.gt.f32.partialorder %v530, 0.0
        %vm613 = vcmp.gt.f32.partialorder %v535, 0.0
        %vm614 = vcmp.gt.f32.partialorder %v540, 0.0
        %vm615 = vcmp.gt.f32.partialorder %v545, 0.0
        %vm616 = vcmp.gt.f32.partialorder %v550, 0.0
        %vm617 = vcmp.gt.f32.partialorder %v555, 0.0
        %vm618 = vcmp.gt.f32.partialorder %v560, 0.0
        %vm619 = vcmp.gt.f32.partialorder %v565, 0.0
        %vm620 = vcmp.gt.f32.partialorder %v570, 0.0
        %vm621 = vcmp.gt.f32.partialorder %v575, 0.0
        %vm622 = vcmp.gt.f32.partialorder %v580, 0.0
        %vm623 = vcmp.gt.f32.partialorder %v585, 0.0
        %vm624 = vcmp.gt.f32.partialorder %v590, 0.0
        %v625 = vmul.f32 %v435, 1.442695
        %v626 = vpow.pop %v625
        %v627 = vmul.f32 %v440, 1.442695
        %v628 = vpow.pop %v627
        %v629 = vmul.f32 %v445, 1.442695
        %v630 = vpow.pop %v629
        %v631 = vmul.f32 %v450, 1.442695
        %v632 = vpow.pop %v631
        %v633 = vmul.f32 %v455, 1.442695
        %v634 = vpow.pop %v633
        %v635 = vmul.f32 %v460, 1.442695
        %v636 = vpow.pop %v635
        %v637 = vmul.f32 %v465, 1.442695
        %v638 = vpow.pop %v637
        %v639 = vmul.f32 %v470, 1.442695
        %v640 = vpow.pop %v639
        %v641 = vmul.f32 %v475, 1.442695
        %v642 = vpow.pop %v641
        %v643 = vmul.f32 %v480, 1.442695
        %v644 = vpow.pop %v643
        %v645 = vmul.f32 %v485, 1.442695
        %v646 = vpow.pop %v645
        %v647 = vmul.f32 %v490, 1.442695
        %v648 = vpow.pop %v647
        %v649 = vmul.f32 %v495, 1.442695
        %v650 = vpow.pop %v649
        %v651 = vmul.f32 %v500, 1.442695
        %v652 = vpow.pop %v651
        %v653 = vmul.f32 %v505, 1.442695
        %v654 = vpow.pop %v653
        %v655 = vmul.f32 %v510, 1.442695
        %v656 = vpow.pop %v655
        %v657 = vmul.f32 %v515, 1.442695
        %v658 = vpow.pop %v657
        %v659 = vmul.f32 %v520, 1.442695
        %v660 = vpow.pop %v659
        %v661 = vmul.f32 %v525, 1.442695
        %v662 = vpow.pop %v661
        %v663 = vmul.f32 %v530, 1.442695
        %v664 = vpow.pop %v663
        %v665 = vmul.f32 %v535, 1.442695
        %v666 = vpow.pop %v665
        %v667 = vmul.f32 %v540, 1.442695
        %v668 = vpow.pop %v667
        %v669 = vmul.f32 %v545, 1.442695
        %v670 = vpow.pop %v669
        %v671 = vmul.f32 %v550, 1.442695
        %v672 = vpow.pop %v671
        %v673 = vmul.f32 %v555, 1.442695
        %v674 = vpow.pop %v673
        %v675 = vmul.f32 %v560, 1.442695
        %v676 = vpow.pop %v675
        %v677 = vmul.f32 %v565, 1.442695
        %v678 = vpow.pop %v677
        %v679 = vmul.f32 %v570, 1.442695
        %v680 = vpow.pop %v679
        %v681 = vmul.f32 %v575, 1.442695
        %v682 = vpow.pop %v681
        %v683 = vmul.f32 %v580, 1.442695
        %v684 = vpow.pop %v683
        %v685 = vmul.f32 %v585, 1.442695
        %v686 = vpow.pop %v685
        %v687 = vmul.f32 %v590, 1.442695
        %v688 = vpow.pop %v687
        %v689 = vsub.f32 %v626, 1.0
        %v690 = vsub.f32 %v628, 1.0
        %v691 = vsub.f32 %v630, 1.0
        %v692 = vsub.f32 %v632, 1.0
        %v693 = vsub.f32 %v634, 1.0
        %v694 = vsub.f32 %v636, 1.0
        %v695 = vsub.f32 %v638, 1.0
        %v696 = vsub.f32 %v640, 1.0
        %v697 = vsub.f32 %v642, 1.0
        %v698 = vsub.f32 %v644, 1.0
        %v699 = vsub.f32 %v646, 1.0
        %v700 = vsub.f32 %v648, 1.0
        %v701 = vsub.f32 %v650, 1.0
        %v702 = vsub.f32 %v652, 1.0
        %v703 = vsub.f32 %v654, 1.0
        %v704 = vsub.f32 %v656, 1.0
        %v705 = vsub.f32 %v658, 1.0
        %v706 = vsub.f32 %v660, 1.0
        %v707 = vsub.f32 %v662, 1.0
        %v708 = vsub.f32 %v664, 1.0
        %v709 = vsub.f32 %v666, 1.0
        %v710 = vsub.f32 %v668, 1.0
        %v711 = vsub.f32 %v670, 1.0
        %v712 = vsub.f32 %v672, 1.0
        %v713 = vsub.f32 %v674, 1.0
        %v714 = vsub.f32 %v676, 1.0
        %v715 = vsub.f32 %v678, 1.0
        %v716 = vsub.f32 %v680, 1.0
        %v717 = vsub.f32 %v682, 1.0
        %v718 = vsub.f32 %v684, 1.0
        %v719 = vsub.f32 %v686, 1.0
        %v720 = vsub.f32 %v688, 1.0
        %v721 = vmul.f32 %v689, 1.6732632
        %v722 = vmul.f32 %v690, 1.6732632
        %v723 = vmul.f32 %v691, 1.6732632
        %v724 = vmul.f32 %v692, 1.6732632
        %v725 = vmul.f32 %v693, 1.6732632
        %v726 = vmul.f32 %v694, 1.6732632
        %v727 = vmul.f32 %v695, 1.6732632
        %v728 = vmul.f32 %v696, 1.6732632
        %v729 = vmul.f32 %v697, 1.6732632
        %v730 = vmul.f32 %v698, 1.6732632
        %v731 = vmul.f32 %v699, 1.6732632
        %v732 = vmul.f32 %v700, 1.6732632
        %v733 = vmul.f32 %v701, 1.6732632
        %v734 = vmul.f32 %v702, 1.6732632
        %v735 = vmul.f32 %v703, 1.6732632
        %v736 = vmul.f32 %v704, 1.6732632
        %v737 = vmul.f32 %v705, 1.6732632
        %v738 = vmul.f32 %v706, 1.6732632
        %v739 = vmul.f32 %v707, 1.6732632
        %v740 = vmul.f32 %v708, 1.6732632
        %v741 = vmul.f32 %v709, 1.6732632
        %v742 = vmul.f32 %v710, 1.6732632
        %v743 = vmul.f32 %v711, 1.6732632
        %v744 = vmul.f32 %v712, 1.6732632
        %v745 = vmul.f32 %v713, 1.6732632
        %v746 = vmul.f32 %v714, 1.6732632
        %v747 = vmul.f32 %v715, 1.6732632
        %v748 = vmul.f32 %v716, 1.6732632
        %v749 = vmul.f32 %v717, 1.6732632
        %v750 = vmul.f32 %v718, 1.6732632
        %v751 = vmul.f32 %v719, 1.6732632
        %v752 = vmul.f32 %v720, 1.6732632
        %v753 = vsel %vm593, %v435, %v721
        %v754 = vsel %vm594, %v440, %v722
        %v755 = vsel %vm595, %v445, %v723
        %v756 = vsel %vm596, %v450, %v724
        %v757 = vsel %vm597, %v455, %v725
        %v758 = vsel %vm598, %v460, %v726
        %v759 = vsel %vm599, %v465, %v727
        %v760 = vsel %vm600, %v470, %v728
        %v761 = vsel %vm601, %v475, %v729
        %v762 = vsel %vm602, %v480, %v730
        %v763 = vsel %vm603, %v485, %v731
        %v764 = vsel %vm604, %v490, %v732
        %v765 = vsel %vm605, %v495, %v733
        %v766 = vsel %vm606, %v500, %v734
        %v767 = vsel %vm607, %v505, %v735
        %v768 = vsel %vm608, %v510, %v736
        %v769 = vsel %vm609, %v515, %v737
        %v770 = vsel %vm610, %v520, %v738
        %v771 = vsel %vm611, %v525, %v739
        %v772 = vsel %vm612, %v530, %v740
        %v773 = vsel %vm613, %v535, %v741
        %v774 = vsel %vm614, %v540, %v742
        %v775 = vsel %vm615, %v545, %v743
        %v776 = vsel %vm616, %v550, %v744
        %v777 = vsel %vm617, %v555, %v745
        %v778 = vsel %vm618, %v560, %v746
        %v779 = vsel %vm619, %v565, %v747
        %v780 = vsel %vm620, %v570, %v748
        %v781 = vsel %vm621, %v575, %v749
        %v782 = vsel %vm622, %v580, %v750
        %v783 = vsel %vm623, %v585, %v751
        %v784 = vsel %vm624, %v590, %v752
        %v785 = vmul.f32 %v753, 1.050701
        %v786 = vmul.f32 %v754, 1.050701
        %v787 = vmul.f32 %v755, 1.050701
        %v788 = vmul.f32 %v756, 1.050701
        %v789 = vmul.f32 %v757, 1.050701
        %v790 = vmul.f32 %v758, 1.050701
        %v791 = vmul.f32 %v759, 1.050701
        %v792 = vmul.f32 %v760, 1.050701
        %v793 = vmul.f32 %v761, 1.050701
        %v794 = vmul.f32 %v762, 1.050701
        %v795 = vmul.f32 %v763, 1.050701
        %v796 = vmul.f32 %v764, 1.050701
        %v797 = vmul.f32 %v765, 1.050701
        %v798 = vmul.f32 %v766, 1.050701
        %v799 = vmul.f32 %v767, 1.050701
        %v800 = vmul.f32 %v768, 1.050701
        %v801 = vmul.f32 %v769, 1.050701
        %v802 = vmul.f32 %v770, 1.050701
        %v803 = vmul.f32 %v771, 1.050701
        %v804 = vmul.f32 %v772, 1.050701
        %v805 = vmul.f32 %v773, 1.050701
        %v806 = vmul.f32 %v774, 1.050701
        %v807 = vmul.f32 %v775, 1.050701
        %v808 = vmul.f32 %v776, 1.050701
        %v809 = vmul.f32 %v777, 1.050701
        %v810 = vmul.f32 %v778, 1.050701
        %v811 = vmul.f32 %v779, 1.050701
        %v812 = vmul.f32 %v780, 1.050701
        %v813 = vmul.f32 %v781, 1.050701
        %v814 = vmul.f32 %v782, 1.050701
        %v815 = vmul.f32 %v783, 1.050701
        %v816 = vmul.f32 %v784, 1.050701
        %v817 = vld [vmem:[%s3] sm:$0xff]
        %v819 = vsel %vm271, %v817, 0
        %v822 = vsel %vm271, %v785, 0
        %v825 = vsel %vm271, %v786, 0
        %v828 = vsel %vm271, %v787, 0
        %v831 = vsel %vm271, %v788, 0
        %v834 = vsel %vm271, %v789, 0
        %v837 = vsel %vm271, %v790, 0
        %v840 = vsel %vm271, %v791, 0
        %v843 = vsel %vm271, %v792, 0
        %v846 = vsel %vm271, %v793, 0
        %v849 = vsel %vm271, %v794, 0
        %v852 = vsel %vm271, %v795, 0
        %v855 = vsel %vm271, %v796, 0
        %v858 = vsel %vm271, %v797, 0
        %v861 = vsel %vm271, %v798, 0
        %v864 = vsel %vm271, %v799, 0
        %v867 = vsel %vm271, %v800, 0
        %v870 = vsel %vm271, %v801, 0
        %v873 = vsel %vm271, %v802, 0
        %v876 = vsel %vm271, %v803, 0
        %v879 = vsel %vm271, %v804, 0
        %v882 = vsel %vm271, %v805, 0
        %v885 = vsel %vm271, %v806, 0
        %v888 = vsel %vm271, %v807, 0
        %v891 = vsel %vm271, %v808, 0
        %v894 = vsel %vm271, %v809, 0
        %v897 = vsel %vm271, %v810, 0
        %v900 = vsel %vm271, %v811, 0
        %v903 = vsel %vm271, %v812, 0
        %v906 = vsel %vm271, %v813, 0
        %v909 = vsel %vm271, %v814, 0
        %v912 = vsel %vm271, %v815, 0
        %v915 = vsel %vm271, %v816, 0
        %917 = vmatprep.subr.mxu0 0.0
        %918 = vmatpush1.xpose.msra.mxu0 %v867
        %919 = vmatprep.subr.mxu0 0.0
        %920 = vmatpush1.xpose.msra.mxu0 %v864
        %921 = vmatprep.subr.mxu0 0.0
        %922 = vmatpush1.xpose.msra.mxu0 %v861
        %923 = vmatprep.subr.mxu0 0.0
        %924 = vmatpush1.xpose.msra.mxu0 %v858
        %925 = vmatprep.subr.mxu0 0.0
        %926 = vmatpush1.xpose.msra.mxu0 %v855
        %927 = vmatprep.subr.mxu0 0.0
        %928 = vmatpush1.xpose.msra.mxu0 %v852
        %929 = vmatprep.subr.mxu0 0.0
        %930 = vmatpush1.xpose.msra.mxu0 %v849
        %931 = vmatprep.subr.mxu0 0.0
        %932 = vmatpush1.xpose.msra.mxu0 %v846
        %933 = vmatprep.subr.mxu0 0.0
        %934 = vmatpush1.xpose.msra.mxu0 %v843
        %935 = vmatprep.subr.mxu0 0.0
        %936 = vmatpush1.xpose.msra.mxu0 %v840
        %937 = vmatprep.subr.mxu0 0.0
        %938 = vmatpush1.xpose.msra.mxu0 %v837
        %939 = vmatprep.subr.mxu0 0.0
        %940 = vmatpush1.xpose.msra.mxu0 %v834
        %941 = vmatprep.subr.mxu0 0.0
        %942 = vmatpush1.xpose.msra.mxu0 %v831
        %943 = vmatprep.subr.mxu0 0.0
        %944 = vmatpush1.xpose.msra.mxu0 %v828
        %945 = vmatprep.subr.mxu0 0.0
        %946 = vmatpush1.xpose.msra.mxu0 %v825
        %947 = vmatprep.subr.mxu0 0.0
        %948 = vmatpush1.xpose.msra.mxu0 %v822
        %949 = vmatprep.subr.mxu0 0.0
        %950 = vmatpush2.xpose.msra.mxu0 %v915
        %951 = vmatprep.subr.mxu0 0.0
        %952 = vmatpush2.xpose.msra.mxu0 %v912
        %953 = vmatprep.subr.mxu0 0.0
        %954 = vmatpush2.xpose.msra.mxu0 %v909
        %955 = vmatprep.subr.mxu0 0.0
        %956 = vmatpush2.xpose.msra.mxu0 %v906
        %957 = vmatprep.subr.mxu0 0.0
        %958 = vmatpush2.xpose.msra.mxu0 %v903
        %959 = vmatprep.subr.mxu0 0.0
        %960 = vmatpush2.xpose.msra.mxu0 %v900
        %961 = vmatprep.subr.mxu0 0.0
        %962 = vmatpush2.xpose.msra.mxu0 %v897
        %963 = vmatprep.subr.mxu0 0.0
        %964 = vmatpush2.xpose.msra.mxu0 %v894
        %965 = vmatprep.subr.mxu0 0.0
        %966 = vmatpush2.xpose.msra.mxu0 %v891
        %967 = vmatprep.subr.mxu0 0.0
        %968 = vmatpush2.xpose.msra.mxu0 %v888
        %969 = vmatprep.subr.mxu0 0.0
        %970 = vmatpush2.xpose.msra.mxu0 %v885
        %971 = vmatprep.subr.mxu0 0.0
        %972 = vmatpush2.xpose.msra.mxu0 %v882
        %973 = vmatprep.subr.mxu0 0.0
        %974 = vmatpush2.xpose.msra.mxu0 %v879
        %975 = vmatprep.subr.mxu0 0.0
        %976 = vmatpush2.xpose.msra.mxu0 %v876
        %977 = vmatprep.subr.mxu0 0.0
        %978 = vmatpush2.xpose.msra.mxu0 %v873
        %979 = vmatprep.subr.mxu0 0.0
        %980 = vmatpush2.xpose.msra.mxu0 %v870
        %981 = vmatprep.mubr.f32.mxu0 0.0
        %982 = vmatmul.mubr.f32.gmra.mxu0 %v819
        %v983 = vpop.f32.mrf.mxu0
        %v984 = vadd.f32 0.0, %v983
        %v985 = vpop.f32.mrf.mxu0
        %v986 = vadd.f32 0.0, %v985
        %987 = vdwg.mxu0
        %v988 = vld [vmem:[#allocation2] sm:$0x1]
        %990 = vset.pattern.permute.xlu0 0
        %991 = vperm.xlu0 %990, %v988
        %v992 = vpop.permute.xlu0 %991
        %v994 = vlaneseq
        %v995 = vshrl.u32 %v994, 7
        %v996 = vsub.s32 0, %v995
        %v997 = vrot.slane %v992, %v996
        %v998 = vadd.f32 %v984, %v997
        %v999 = vadd.f32 %v986, %v997
        %v1002 = vcombine.low %v998, %v999
        %v1004 = vunpack.c.l.s4 1966171168
        %v1005 = vunpack.c.0.s8 %v1004
        %v1006 = vlaneseq
        %v1007 = vshrl.u32 %v1006, 7
        %v1008 = vsub.s32 %v1005, %v1007
        %v1009 = vrot.slane %v1002, %v1008
        %v1011 = vunpack.c.l.s4 1966171168
        %v1012 = vunpack.c.0.s8 %v1011
        %v1013 = vlaneseq
        %v1014 = vshrl.u32 %v1013, 7
        %v1015 = vsub.s32 %v1012, %v1014
        %v1016 = vrot.slane %v1009, %v1015
        %v1018 = vlaneseq
        %vm1019 = vcmp.ge.s32.totalorder %v1018, 0
        %vm1020 = vcmp.lt.s32.totalorder %v1018, 256
        %vm1021 = vmand %vm1019, %vm1020
        %1022 = vst.msk [vmem:[%s220] sm:$0x3] %vm1021, %v1016
        %s1023 = sand.u32 %s139, 1
        %s1024 = scalar_lea.sflag [#allocation4], %s1023
        %s1025 = sand.u32 %s139, 1
        %s1026 = smul.addr %s1025, 2
        %s1027 = scalar_lea.vmem [#allocation3], %s1026
        // Predicated region
        $region41: #{distinguisher_forward.1} parent=39 // pred_check
          %p1028 = pneg %p149
        $region42: #{distinguisher_forward.1} parent=39 // pred_check_branch
          %1030 = sbr.rel (%p1028) target = $region44
        $region43: #{distinguisher_forward.1} parent=39 // pred_region
          %s1031 = smul.u32 2, %s21
          %s1033 = ssub.s32 32, 32
          %1034 = vsyncadd %s1024, %s1033
          %s1035 = smul.addr %s1031, 16
          %s1036 = scalar_lea.hbm %s5, %s1035
          %s1038 = sshll.u32 %s1027, 4
          %s1039 = int_to_ptr.vmem [resolvable:$true] %s1038
          %1041 = dma.vmem_to_hbm [thread:$0]  %s1039, 32, %s1036, %s1024
        $region44: #{distinguisher_forward.1} parent=39 // pred_fallthru
          _
      $region40: #{distinguisher_forward.1} parent=5 // pred_fallthru
        _
      %p1042 = scmp.le.s32.totalorder 2, %s16
      // Predicated region
      $region45: #{distinguisher_forward.1} parent=5 // pred_check
        %p1043 = pneg %p1042
      $region46: #{distinguisher_forward.1} parent=5 // pred_check_branch
        %1045 = sbr.rel (%p1043) target = $region48
      $region47: #{distinguisher_forward.1} parent=5 // pred_region
        %s1046 = ssub.s32 %s16, 2
        // Predicated region
        $region49: #{distinguisher_forward.1} parent=47 // pred_check
          %p1047 = pneg %p155
        $region50: #{distinguisher_forward.1} parent=47 // pred_check_branch
          %1049 = sbr.rel (%p1047) target = $region52
        $region51: #{distinguisher_forward.1} parent=47 // pred_region
          %s1050 = sand.u32 %s140, 1
          %s1051 = scalar_lea.sflag [#allocation4], %s1050
          %s1052 = sand.u32 %s140, 1
          %s1053 = smul.addr %s1052, 2
          %s1054 = scalar_lea.vmem [#allocation3], %s1053
          %1055 = dma.done %s1051, 32
        $region52: #{distinguisher_forward.1} parent=47 // pred_fallthru
          _
      $region48: #{distinguisher_forward.1} parent=5 // pred_fallthru
        _
    $region6: #{distinguisher_forward.1} parent=1 // loop_footer
      %s20 = sadd.s32 1, %s16
    $region7: #{distinguisher_forward.1} parent=1 // loop_footer_branch
      %15 = sbr.rel target = $region3
    $region8: #{distinguisher_forward.1} parent=1 // loop_exit
      _
    %1056 = vsyncpa [#allocation4], 1
    %s1057 = scalar_lea.sflag [#allocation4], 1
    %1058 = vsyncpa %s1057, 1

</llo_original>
